<compile_context>
chip_gen: v7x
topology: tpu7x:2x2x1
jax: 0.10.0
libtpu: 0.0.40
codegen_flags: <defaults>
</compile_context>

<pallas_src>
import math

import jax
import jax.numpy as jnp
from jax.experimental import pallas as pl
from jax.experimental.pallas import tpu as pltpu

_LANE = 128


def _round_up(x, m):
    return ((x + m - 1) // m) * m


def _cdiv(a, b):
    return (a + b - 1) // b


def _sublane(dtype):
    # f32 -> 8 sublanes per vreg tile; bf16/f16 pack 2 rows/sublane -> 16.
    return 8 if jnp.dtype(dtype).itemsize == 4 else 16


def _vmem_limit_bytes():
    """Generation-aware scoped-VMEM limit with headroom under physical VMEM."""
    try:
        phys = int(pltpu.get_tpu_info().vmem_capacity_bytes)
    except Exception:
        phys = 128 * 1024 * 1024
    # v5e/v6e (128 MiB physical) -> 96 MiB scoped; v7x (64 MiB) -> 48 MiB.
    return max(32 * 1024 * 1024, min((phys * 3) // 4, 96 * 1024 * 1024))


def _choose_tiles(m, k, n, in_dtype, budget_bytes):
    """Pick (tm, tk, tn) that fill the per-generation VMEM budget."""
    sub = _sublane(in_dtype)
    isz = jnp.dtype(in_dtype).itemsize
    mp, kp, np_ = _round_up(m, sub), _round_up(k, _LANE), _round_up(n, _LANE)

    # Small-batch problems are weight-HBM-bound: stream the weight in the
    # fewest, largest DMAs.
    cap_kn = 4096 if mp <= 128 else 2048
    tm = min(mp, 512)
    if tm >= _LANE:  # MXU-friendly 128-aligned M tiles when B is large
        tm = (tm // _LANE) * _LANE
    tk = min(kp, cap_kn)
    tn = min(np_, cap_kn)

    def footprint(tm_, tk_, tn_):
        # Double-buffered x/w/out tiles + worst-case f32 accumulator.
        return isz * 2 * (tm_ * tk_ + tk_ * tn_ + tm_ * tn_) + 4 * tm_ * tn_

    while footprint(tm, tk, tn) > budget_bytes and max(tk, tn) > _LANE:
        if tk >= tn:
            tk = max(_LANE, _round_up(tk // 2, _LANE))
        else:
            tn = max(_LANE, _round_up(tn // 2, _LANE))
    while footprint(tm, tk, tn) > budget_bytes and tm > sub:
        tm = max(sub, _round_up(tm // 2, sub))

    # Megacore (v7x: 2 TCs/chip): keep >= 2 tiles on a parallel grid axis when
    # M fits in a single tile, otherwise one TensorCore idles.
    if _cdiv(mp, tm) <= 1 and _cdiv(np_, tn) < 2 and np_ >= 2 * _LANE:
        tn = _round_up(_cdiv(np_, 2), _LANE)

    return tm, tk, tn


# ----------------------------- kernel bodies ------------------------------- #
def _linear_kernel_single_k(x_ref, w_ref, b_ref, o_ref):
    """Whole K fits one tile: direct dot + bias, no scratch accumulator."""
    acc = jnp.dot(x_ref[...], w_ref[...], preferred_element_type=jnp.float32)
    o_ref[...] = (acc + b_ref[...]).astype(o_ref.dtype)


def _linear_kernel_accum_out(x_ref, w_ref, b_ref, o_ref):
    """K-grid reduction accumulating into the resident f32 output block."""
    k = pl.program_id(2)

    @pl.when(k == 0)
    def _init():
        o_ref[...] = jnp.broadcast_to(b_ref[...], o_ref.shape)

    o_ref[...] += jnp.dot(x_ref[...], w_ref[...], preferred_element_type=jnp.float32)


def _linear_kernel_scratch_acc(x_ref, w_ref, b_ref, o_ref, acc_ref):
    """K-grid reduction into an f32 scratch; bias add + cast once at the end."""
    k = pl.program_id(2)

    @pl.when(k == 0)
    def _init():
        acc_ref[...] = jnp.zeros_like(acc_ref)

    acc_ref[...] += jnp.dot(x_ref[...], w_ref[...], preferred_element_type=jnp.float32)

    @pl.when(k == pl.num_programs(2) - 1)
    def _finalize():
        o_ref[...] = (acc_ref[...] + b_ref[...]).astype(o_ref.dtype)


# --------------------------------- wrapper --------------------------------- #
def single_layer_linear(x, weight_t, bias, *, tm=None, tk=None, tn=None,
                        compute_dtype=None, force_pallas=False):
    """y = x @ weight_t + bias  ==  torch.nn.Linear(in, out, bias=True).forward.

    x:        (B, in_features)
    weight_t: (in_features, out_features)   (W^T in torch terms)
    bias:     (out_features,) or (1, out_features)
    compute_dtype: optionally cast x/weight (e.g. jnp.bfloat16) before the MXU;
                   accumulation and the bias epilogue stay in f32.
    """
    B, K = x.shape
    Kw, N = weight_t.shape
    assert K == Kw, (K, Kw)
    out_dtype = x.dtype
    bias2d = bias.reshape(1, N).astype(jnp.float32)

    if compute_dtype is not None:
        x = x.astype(compute_dtype)
        weight_t = weight_t.astype(compute_dtype)
    in_dtype = x.dtype

    # Tiny problems: pad ops + custom-call dispatch dominate; let XLA fuse.
    if (not force_pallas and tm is None and tk is None and tn is None
            and B * K * N < (1 << 17)):
        y = jnp.dot(x, weight_t, preferred_element_type=jnp.float32) + bias2d
        return y.astype(out_dtype)

    vmem_limit = _vmem_limit_bytes()
    sub = _sublane(in_dtype)

    atm, atk, atn = _choose_tiles(B, K, N, in_dtype, (vmem_limit * 2) // 3)
    tm = atm if tm is None else tm
    tk = atk if tk is None else tk
    tn = atn if tn is None else tn

    # Guard user-supplied tiles; misaligned blocks cause Mosaic lowering errors.
    if tm % sub or tk % _LANE or tn % _LANE:
        raise ValueError(
            f"tile sizes must satisfy tm % {sub} == 0, tk % {_LANE} == 0, "
            f"tn % {_LANE} == 0; got tm={tm}, tk={tk}, tn={tn}")

    Mp, Kp, Np = _round_up(B, tm), _round_up(K, tk), _round_up(N, tn)

    # Zero-padding keeps the math exact (padded K contributes 0 to the dot,
    # padded M/N rows are sliced off); all pads are skipped when already aligned.
    x_p = x if (Mp == B and Kp == K) else jnp.pad(x, ((0, Mp - B), (0, Kp - K)))
    w_p = (weight_t if (Kp == K and Np == N)
           else jnp.pad(weight_t, ((0, Kp - K), (0, Np - N))))
    b_p = bias2d if Np == N else jnp.pad(bias2d, ((0, 0), (0, Np - N)))

    mt, nt, kt = Mp // tm, Np // tn, Kp // tk
    vmem = pltpu.MemorySpace.VMEM
    isz = jnp.dtype(in_dtype).itemsize

    # Account for grid re-reads: x streams nt times, the weight mt times.
    cost = pl.CostEstimate(
        flops=2 * Mp * Kp * Np,
        transcendentals=0,
        bytes_accessed=(isz * (Mp * Kp * nt + Kp * Np * mt)
                        + 4 * Np
                        + jnp.dtype(out_dtype).itemsize * Mp * Np),
    )

    if kt == 1:
        grid = (mt, nt)
        kernel = _linear_kernel_single_k
        in_specs = [
            pl.BlockSpec((tm, tk), lambda i, j: (i, 0), memory_space=vmem),
            pl.BlockSpec((tk, tn), lambda i, j: (0, j), memory_space=vmem),
            pl.BlockSpec((1, tn), lambda i, j: (0, j), memory_space=vmem),
        ]
        out_spec = pl.BlockSpec((tm, tn), lambda i, j: (i, j), memory_space=vmem)
        scratch = []
        dims = ("parallel", "parallel")
    else:
        grid = (mt, nt, kt)
        in_specs = [
            pl.BlockSpec((tm, tk), lambda i, j, k: (i, k), memory_space=vmem),
            pl.BlockSpec((tk, tn), lambda i, j, k: (k, j), memory_space=vmem),
            pl.BlockSpec((1, tn), lambda i, j, k: (0, j), memory_space=vmem),
        ]
        out_spec = pl.BlockSpec((tm, tn), lambda i, j, k: (i, j), memory_space=vmem)
        dims = ("parallel", "parallel", "arbitrary")
        if jnp.dtype(out_dtype) == jnp.dtype(jnp.float32):
            # f32 output block is resident across k: accumulate straight into it.
            kernel = _linear_kernel_accum_out
            scratch = []
        else:
            kernel = _linear_kernel_scratch_acc
            scratch = [pltpu.VMEM((tm, tn), jnp.float32)]

    out_p = pl.pallas_call(
        kernel,
        out_shape=jax.ShapeDtypeStruct((Mp, Np), out_dtype),
        grid_spec=pltpu.PrefetchScalarGridSpec(
            num_scalar_prefetch=0,
            grid=grid,
            in_specs=in_specs,
            out_specs=out_spec,
            scratch_shapes=scratch,
        ),
        compiler_params=pltpu.CompilerParams(
            dimension_semantics=dims,
            vmem_limit_bytes=vmem_limit,
        ),
        cost_estimate=cost,
    )(x_p, w_p, b_p)

    return out_p[:B, :N]


def init_linear_params(key, in_features, out_features):
    """Matches torch.nn.Linear default init: U(-1/sqrt(fan_in), 1/sqrt(fan_in))."""
    k_w, k_b = jax.random.split(key)
    bound = 1.0 / math.sqrt(in_features)
    w = jax.random.uniform(
        k_w, (out_features, in_features), jnp.float32, minval=-bound, maxval=bound
    )
    b = jax.random.uniform(
        k_b, (out_features,), jnp.float32, minval=-bound, maxval=bound
    )
    return w.T, b  # weight in (in, out) layout for the kernel


if __name__ == "__main__":
    # --- Exact shape/input from the PyTorch script: (1, 9) -> Linear(9, 4) ---
    input_size, output_size = 9, 4
    x = jnp.array([[1, 0, 1, 0, 1, 0, 1, 0, 1]], dtype=jnp.float32)

    key = jax.random.PRNGKey(0)
    weight_t, bias = init_linear_params(key, input_size, output_size)
    y_ref = x @ weight_t + bias.reshape(1, -1)

    y_fast = single_layer_linear(x, weight_t, bias)                   # XLA fast path
    y_pallas = single_layer_linear(x, weight_t, bias, force_pallas=True)  # Pallas path
    jax.block_until_ready((y_fast, y_pallas))
    assert y_fast.shape == (1, output_size), y_fast.shape
    assert jnp.allclose(y_fast, y_ref, atol=1e-4, rtol=1e-4), (y_fast, y_ref)
    assert jnp.allclose(y_pallas, y_ref, atol=1e-4, rtol=1e-4), (y_pallas, y_ref)

    # --- Single-K-step (no accumulator) Pallas path, default tiles. ----------
    B2, K2, N2 = 16, 384, 256
    kx, kp = jax.random.split(jax.random.PRNGKey(1))
    x2 = jax.random.normal(kx, (B2, K2), jnp.float32)
    w2, b2 = init_linear_params(kp, K2, N2)
    y2 = single_layer_linear(x2, w2, b2, force_pallas=True)
    jax.block_until_ready(y2)
    y2_ref = x2 @ w2 + b2.reshape(1, -1)
    assert y2.shape == (B2, N2), y2.shape
    assert jnp.allclose(y2, y2_ref, atol=1e-3, rtol=1e-3), float(
        jnp.max(jnp.abs(y2 - y2_ref)))

    # --- Multi-K-step, f32 output -> accumulate-into-output path. ------------
    B3, K3, N3 = 8, 256, 256
    kx, kp = jax.random.split(jax.random.PRNGKey(2))
    x3 = jax.random.normal(kx, (B3, K3), jnp.float32)
    w3, b3 = init_linear_params(kp, K3, N3)
    y3 = single_layer_linear(x3, w3, b3, tm=8, tk=128, tn=128, force_pallas=True)
    jax.block_until_ready(y3)
    y3_ref = x3 @ w3 + b3.reshape(1, -1)
    assert jnp.allclose(y3, y3_ref, atol=1e-3, rtol=1e-3), float(
        jnp.max(jnp.abs(y3 - y3_ref)))

    # --- Multi-K-step, bf16 operands + bf16 output -> f32 scratch accumulator.
    x4 = x3.astype(jnp.bfloat16)
    w4 = w3.astype(jnp.bfloat16)
    y4 = single_layer_linear(x4, w4, b3, tm=16, tk=128, tn=128, force_pallas=True)
    jax.block_until_ready(y4)
    y4_ref = x4.astype(jnp.float32) @ w4.astype(jnp.float32) + b3.reshape(1, -1)
    assert y4.dtype == jnp.bfloat16, y4.dtype
    assert jnp.allclose(y4.astype(jnp.float32), y4_ref, atol=5e-2, rtol=5e-2), float(
        jnp.max(jnp.abs(y4.astype(jnp.float32) - y4_ref)))

    print("KERNEL_OK")
</pallas_src>

<mosaic_0001>
module attributes {stable_mosaic.version = 11 : i64} {
  func.func @_linear_kernel_single_k(%arg0: i32, %arg1: i32, %arg2: memref<8x128xf32, #tpu.memory_space<vmem>>, %arg3: memref<128x128xf32, #tpu.memory_space<vmem>>, %arg4: memref<1x128xf32, #tpu.memory_space<vmem>>, %arg5: memref<8x128xf32, #tpu.memory_space<vmem>>) attributes {dimension_semantics = [#tpu.dimension_semantics<parallel>, #tpu.dimension_semantics<parallel>], iteration_bounds = array<i64: 1, 1>, scalar_prefetch = 0 : i64, scratch_operands = 0 : i64, tpu.core_type = #tpu.core_type<tc>, window_params = [{transform_indices = @transform_0, window_bounds = array<i64: 8, 128>}, {transform_indices = @transform_1, window_bounds = array<i64: 128, 128>}, {transform_indices = @transform_2, window_bounds = array<i64: 1, 128>}, {transform_indices = @transform_3, window_bounds = array<i64: 8, 128>}]} {
    %c0 = arith.constant 0 : index
    %c0_0 = arith.constant 0 : index
    %0 = vector.load %arg2[%c0, %c0_0] : memref<8x128xf32, #tpu.memory_space<vmem>>, vector<8x128xf32>
    %c0_1 = arith.constant 0 : index
    %c0_2 = arith.constant 0 : index
    %1 = vector.load %arg3[%c0_1, %c0_2] : memref<128x128xf32, #tpu.memory_space<vmem>>, vector<128x128xf32>
    %cst = arith.constant dense<0.000000e+00> : vector<8x128xf32>
    %2 = tpu.matmul %0, %1, %cst {dimension_numbers = #tpu.dot_dimension_numbers<[1], [0], [0], [1], [0, 0, 1, 1], [], []>} : vector<8x128xf32>, vector<128x128xf32>, vector<8x128xf32> -> vector<8x128xf32>
    %c0_3 = arith.constant 0 : index
    %c0_4 = arith.constant 0 : index
    %3 = vector.load %arg4[%c0_3, %c0_4] : memref<1x128xf32, #tpu.memory_space<vmem>>, vector<1x128xf32>
    %4 = vector.broadcast %3 : vector<1x128xf32> to vector<8x128xf32>
    %5 = arith.addf %2, %4 : vector<8x128xf32>
    %c0_5 = arith.constant 0 : index
    %c0_6 = arith.constant 0 : index
    %6 = vector.load %arg5[%c0_5, %c0_6] : memref<8x128xf32, #tpu.memory_space<vmem>>, vector<8x128xf32>
    tpu.vector_store %arg5[%c0_5, %c0_6], %5 {strides = array<i32>} : memref<8x128xf32, #tpu.memory_space<vmem>>, vector<8x128xf32>,
    return
  }
  func.func @transform_0(%arg0: i32, %arg1: i32) -> (i32, i32) {
    %c0_i32 = arith.constant 0 : i32
    %c0_i32_0 = arith.constant 0 : i32
    return %arg0, %c0_i32 : i32, i32
  }
  func.func @transform_1(%arg0: i32, %arg1: i32) -> (i32, i32) {
    %c0_i32 = arith.constant 0 : i32
    %c0_i32_0 = arith.constant 0 : i32
    return %c0_i32, %arg1 : i32, i32
  }
  func.func @transform_2(%arg0: i32, %arg1: i32) -> (i32, i32) {
    %c0_i32 = arith.constant 0 : i32
    %c0_i32_0 = arith.constant 0 : i32
    return %c0_i32, %arg1 : i32, i32
  }
  func.func @transform_3(%arg0: i32, %arg1: i32) -> (i32, i32) {
    %c0_i32 = arith.constant 0 : i32
    return %arg0, %arg1 : i32, i32
  }
}

</mosaic_0001>

<llo_original>
// kernel: tpu_custom_call.1
$region0: #{tpu_custom_call.1}
  #allocation0 [shape = 'u32[]', space=smem, size = 0x4, offset = 0x4, fixed_abs, tag = 'smem constant byte address 0x4 - core index']
  #allocation1 [shape = 'u32[144,128]{1,0:T(1,128)}', space=vmem, size = 0x12000, scoped, tag = 'internal scratch']
  %s0 = inlined_call_operand.hbm [shape: f32[8,128], index: 0, kind: input, shape index: {}]
  %s1 = inlined_call_operand.hbm [shape: f32[128,128], index: 1, kind: input, shape index: {}]
  %s2 = inlined_call_operand.hbm [shape: f32[1,128], index: 2, kind: input, shape index: {}]
  %s3 = inlined_call_operand.hbm [shape: f32[8,128], index: 3, kind: output, shape index: {}]
  %s4 = sld [smem:[#allocation0]]
  $region34: #{tpu_custom_call.1} parent=0
    _
  %s6 = ssub.s32 1, %s4
  %s7 = scalar_select 0, %s6, %s4
  $region1: #{tpu_custom_call.1} parent=0
    #allocation2 [shape = 'u8[4096]{0}', space=vmem, size = 0x1000, scoped, tag = 'input window, operand 0, single buffered']
    #allocation3 [shape = 's32[1]{0}', space=sflag, size = 0x4, scoped, tag = 'scoped memory for tpu_custom_call.1']
    #allocation4 [shape = 's32[1]{0}', space=sflag, size = 0x4, scoped, tag = 'scoped memory for tpu_custom_call.1']
    #allocation5 [shape = 'u8[65536]{0}', space=vmem, size = 0x10000, scoped, tag = 'input window, operand 1, single buffered']
    #allocation6 [shape = 's32[1]{0}', space=sflag, size = 0x4, scoped, tag = 'scoped memory for tpu_custom_call.1']
    #allocation7 [shape = 'u8[512]{0}', space=vmem, size = 0x400, scoped, tag = 'input window, operand 2, single buffered']
    #allocation8 [shape = 'u8[4096]{0}', space=vmem, size = 0x1000, scoped, tag = 'output window, operand 0, single buffered']
    %8 = vsyncpa [#allocation3], 0
    %9 = vsyncpa [#allocation6], 0
    %10 = vsyncpa [#allocation4], 0
    // Predicated region
    $region2: #{tpu_custom_call.1} parent=1 // pred_check
      _
    $region3: #{tpu_custom_call.1} parent=1 // pred_check_branch
      %12 = sbr.rel (0) target = $region5
    $region4: #{tpu_custom_call.1} parent=1 // pred_region
      %s14 = ssub.s32 128, 128
      %15 = vsyncadd [#allocation3], %s14
      %s17 = sshll.u32 [#allocation2], 4
      %s18 = int_to_ptr.vmem [resolvable:$true] %s17
      %20 = dma.hbm_to_vmem [thread:$0]  %s0, 128, %s18, [#allocation3]
    $region5: #{tpu_custom_call.1} parent=1 // pred_fallthru
      _
    // Predicated region
    $region6: #{tpu_custom_call.1} parent=1 // pred_check
      _
    $region7: #{tpu_custom_call.1} parent=1 // pred_check_branch
      %22 = sbr.rel (0) target = $region9
    $region8: #{tpu_custom_call.1} parent=1 // pred_region
      %s24 = ssub.s32 2048, 2048
      %25 = vsyncadd [#allocation6], %s24
      %s26 = sshll.u32 [#allocation5], 4
      %s27 = int_to_ptr.vmem [resolvable:$true] %s26
      %32 = dma.hbm_to_vmem [thread:$0]  %s1, 2048, %s27, [#allocation6], 128, 128, 8
    $region9: #{tpu_custom_call.1} parent=1 // pred_fallthru
      _
    // Predicated region
    $region10: #{tpu_custom_call.1} parent=1 // pred_check
      _
    $region11: #{tpu_custom_call.1} parent=1 // pred_check_branch
      %34 = sbr.rel (0) target = $region13
    $region12: #{tpu_custom_call.1} parent=1 // pred_region
      %s36 = ssub.s32 16, 16
      %37 = vsyncadd [#allocation6], %s36
      %s39 = sshll.u32 [#allocation7], 4
      %s40 = int_to_ptr.vmem [resolvable:$true] %s39
      %42 = dma.hbm_to_vmem [thread:$0]  %s2, 16, %s40, [#allocation6]
    $region13: #{tpu_custom_call.1} parent=1 // pred_fallthru
      _
    // Predicated region
    $region14: #{tpu_custom_call.1} parent=1 // pred_check
      _
    $region15: #{tpu_custom_call.1} parent=1 // pred_check_branch
      %44 = sbr.rel (0) target = $region17
    $region16: #{tpu_custom_call.1} parent=1 // pred_region
      %45 = dma.done [#allocation3], 128
    $region17: #{tpu_custom_call.1} parent=1 // pred_fallthru
      _
    // Predicated region
    $region18: #{tpu_custom_call.1} parent=1 // pred_check
      _
    $region19: #{tpu_custom_call.1} parent=1 // pred_check_branch
      %47 = sbr.rel (0) target = $region21
    $region20: #{tpu_custom_call.1} parent=1 // pred_region
      %48 = dma.done [#allocation6], 2048
    $region21: #{tpu_custom_call.1} parent=1 // pred_fallthru
      _
    // Predicated region
    $region22: #{tpu_custom_call.1} parent=1 // pred_check
      _
    $region23: #{tpu_custom_call.1} parent=1 // pred_check_branch
      %50 = sbr.rel (0) target = $region25
    $region24: #{tpu_custom_call.1} parent=1 // pred_region
      %51 = dma.done [#allocation6], 16
    $region25: #{tpu_custom_call.1} parent=1 // pred_fallthru
      _
    %v52 = vld [vmem:[#allocation2] sm:$0xff]
    %v53 = vld [vmem:[#allocation5] sm:$0xff]
    %v54 = vld [vmem:[#allocation5 + $0x8] sm:$0xff]
    %v55 = vld [vmem:[#allocation5 + $0x10] sm:$0xff]
    %v56 = vld [vmem:[#allocation5 + $0x18] sm:$0xff]
    %v57 = vld [vmem:[#allocation5 + $0x20] sm:$0xff]
    %v58 = vld [vmem:[#allocation5 + $0x28] sm:$0xff]
    %v59 = vld [vmem:[#allocation5 + $0x30] sm:$0xff]
    %v60 = vld [vmem:[#allocation5 + $0x38] sm:$0xff]
    %v61 = vld [vmem:[#allocation5 + $0x40] sm:$0xff]
    %v62 = vld [vmem:[#allocation5 + $0x48] sm:$0xff]
    %v63 = vld [vmem:[#allocation5 + $0x50] sm:$0xff]
    %v64 = vld [vmem:[#allocation5 + $0x58] sm:$0xff]
    %v65 = vld [vmem:[#allocation5 + $0x60] sm:$0xff]
    %v66 = vld [vmem:[#allocation5 + $0x68] sm:$0xff]
    %v67 = vld [vmem:[#allocation5 + $0x70] sm:$0xff]
    %v68 = vld [vmem:[#allocation5 + $0x78] sm:$0xff]
    %v69 = vld [vmem:[#allocation7] sm:$0x1]
    %v71 = vlaneseq
    %v72 = vshrl.u32 %v71, 7
    %v73 = vsub.s32 0, %v72
    %v74 = vrot.slane %v69, %v73
    %76 = vmatprep.subr.mxu0 0.0
    %77 = vmatpush1.msra.mxu0 %v53
    %78 = vmatprep.subr.mxu0 0.0
    %79 = vmatpush1.msra.mxu0 %v54
    %80 = vmatprep.subr.mxu0 0.0
    %81 = vmatpush1.msra.mxu0 %v55
    %82 = vmatprep.subr.mxu0 0.0
    %83 = vmatpush1.msra.mxu0 %v56
    %84 = vmatprep.subr.mxu0 0.0
    %85 = vmatpush1.msra.mxu0 %v57
    %86 = vmatprep.subr.mxu0 0.0
    %87 = vmatpush1.msra.mxu0 %v58
    %88 = vmatprep.subr.mxu0 0.0
    %89 = vmatpush1.msra.mxu0 %v59
    %90 = vmatprep.subr.mxu0 0.0
    %91 = vmatpush1.msra.mxu0 %v60
    %92 = vmatprep.subr.mxu0 0.0
    %93 = vmatpush1.msra.mxu0 %v61
    %94 = vmatprep.subr.mxu0 0.0
    %95 = vmatpush1.msra.mxu0 %v62
    %96 = vmatprep.subr.mxu0 0.0
    %97 = vmatpush1.msra.mxu0 %v63
    %98 = vmatprep.subr.mxu0 0.0
    %99 = vmatpush1.msra.mxu0 %v64
    %100 = vmatprep.subr.mxu0 0.0
    %101 = vmatpush1.msra.mxu0 %v65
    %102 = vmatprep.subr.mxu0 0.0
    %103 = vmatpush1.msra.mxu0 %v66
    %104 = vmatprep.subr.mxu0 0.0
    %105 = vmatpush1.msra.mxu0 %v67
    %106 = vmatprep.subr.mxu0 0.0
    %107 = vmatpush1.msra.mxu0 %v68
    %108 = vmatprep.subr.mxu0 0.0
    %109 = vmatpush1.msra.mxu0 0.0
    %110 = vmatprep.subr.mxu0 0.0
    %111 = vmatpush1.msra.mxu0 0.0
    %112 = vmatprep.subr.mxu0 0.0
    %113 = vmatpush1.msra.mxu0 0.0
    %114 = vmatprep.subr.mxu0 0.0
    %115 = vmatpush1.msra.mxu0 0.0
    %116 = vmatprep.subr.mxu0 0.0
    %117 = vmatpush1.msra.mxu0 0.0
    %118 = vmatprep.subr.mxu0 0.0
    %119 = vmatpush1.msra.mxu0 0.0
    %120 = vmatprep.subr.mxu0 0.0
    %121 = vmatpush1.msra.mxu0 0.0
    %122 = vmatprep.subr.mxu0 0.0
    %123 = vmatpush1.msra.mxu0 0.0
    %124 = vmatprep.subr.mxu0 0.0
    %125 = vmatpush1.msra.mxu0 0.0
    %126 = vmatprep.subr.mxu0 0.0
    %127 = vmatpush1.msra.mxu0 0.0
    %128 = vmatprep.subr.mxu0 0.0
    %129 = vmatpush1.msra.mxu0 0.0
    %130 = vmatprep.subr.mxu0 0.0
    %131 = vmatpush1.msra.mxu0 0.0
    %132 = vmatprep.subr.mxu0 0.0
    %133 = vmatpush1.msra.mxu0 0.0
    %134 = vmatprep.subr.mxu0 0.0
    %135 = vmatpush1.msra.mxu0 0.0
    %136 = vmatprep.subr.mxu0 0.0
    %137 = vmatpush1.msra.mxu0 0.0
    %138 = vmatprep.subr.mxu0 0.0
    %139 = vmatpush1.msra.mxu0 0.0
    %140 = vmatprep.mubr.f32.mxu0 0.0
    %141 = vmatmul.mubr.f32.gmra.mrb[0].mxu0 %v52
    %v142 = vpop.f32.mrb[0].mxu0
    %v143 = vadd.f32 %v74, %v142
    %v144 = vpop.f32.mrb[0].mxu0
    %145 = vdwg.mxu0
    %146 = vst [vmem:[#allocation8] sm:$0xff] %v143
    // Predicated region
    $region26: #{tpu_custom_call.1} parent=1 // pred_check
      _
    $region27: #{tpu_custom_call.1} parent=1 // pred_check_branch
      %148 = sbr.rel (0) target = $region29
    $region28: #{tpu_custom_call.1} parent=1 // pred_region
      %s150 = ssub.s32 128, 128
      %151 = vsyncadd [#allocation4], %s150
      %s153 = sshll.u32 [#allocation8], 4
      %s154 = int_to_ptr.vmem [resolvable:$true] %s153
      %156 = dma.vmem_to_hbm [thread:$0]  %s154, 128, %s3, [#allocation4]
    $region29: #{tpu_custom_call.1} parent=1 // pred_fallthru
      _
    // Predicated region
    $region30: #{tpu_custom_call.1} parent=1 // pred_check
      _
    $region31: #{tpu_custom_call.1} parent=1 // pred_check_branch
      %158 = sbr.rel (0) target = $region33
    $region32: #{tpu_custom_call.1} parent=1 // pred_region
      %159 = dma.done [#allocation4], 128
    $region33: #{tpu_custom_call.1} parent=1 // pred_fallthru
      _
    %160 = vsyncpa [#allocation3], 1
    %161 = vsyncpa [#allocation6], 1
    %162 = vsyncpa [#allocation4], 1

</llo_original>
